<compile_context>
chip_gen: v7x
topology: tpu7x:2x2x1
jax: 0.10.0
libtpu: 0.0.40
codegen_flags: <defaults>
</compile_context>

<pallas_src>
import jax
import jax.numpy as jnp
from jax.experimental import pallas as pl
from jax.experimental.pallas import tpu as pltpu


def _bcast_mul_kernel(x_ref, inv_ref, o_ref):
    # inv_ref is the precomputed (1, lane) reciprocal of the constant row; the
    # body is a single broadcast multiply, so each step is pure HBM streaming.
    o_ref[...] = x_ref[...] * inv_ref[...]


def _chip_plan():
    """Per-generation (target_block_bytes, vmem_limit_bytes, min_grid_steps)."""
    v7x_plan = (8 * 1024 * 1024, 48 * 1024 * 1024, 2)   # 64 MiB phys VMEM, 2 TCs
    v6e_plan = (4 * 1024 * 1024, 64 * 1024 * 1024, 1)   # 128 MiB phys VMEM
    v5e_plan = (2 * 1024 * 1024, 32 * 1024 * 1024, 1)   # ~820 GB/s, small tiles fine

    kind = ""
    try:
        kind = jax.devices()[0].device_kind.lower()
    except Exception:
        pass
    vmem_phys = None
    try:
        vmem_phys = getattr(pltpu.get_tpu_info(), "vmem_capacity_bytes", None)
    except Exception:
        pass

    if "v7" in kind or (vmem_phys is not None and vmem_phys <= 80 * 1024 * 1024):
        return v7x_plan
    if "v5" in kind:
        return v5e_plan
    return v6e_plan


def _divisors_leq(n, cap):
    cap = max(1, min(cap, n))
    return [d for d in range(1, cap + 1) if n % d == 0]


def _legal_row_tiles(rows2):
    """Row tiles that satisfy the (8,128) rule: multiples of 8, or the full extent."""
    tiles = [d for d in range(8, rows2, 8) if rows2 % d == 0]
    tiles.append(rows2)  # the full extent is always a legal block dim
    return tiles


def _plan_tiling(rows, w, target_block_bytes, min_grid, target_lane_mult=8):
    """Pick (k, lane, rows2, row_tile): fold k rows of `w` into the lane axis and
    tile the remaining row axis.  Prefers plans with >= min_grid grid steps (so
    v7x's two TensorCores both get work), then the widest lane fold, then the
    largest aligned row tile not exceeding target_block_bytes."""
    fallback = None
    for k in sorted(_divisors_leq(rows, target_lane_mult), reverse=True):
        lane = k * w
        rows2 = rows // k
        target_rows = max(1, target_block_bytes // (lane * 4))
        tiles = _legal_row_tiles(rows2)

        multi = [t for t in tiles if rows2 // t >= min_grid]
        if multi:
            under = [t for t in multi if t <= target_rows]
            row_tile = max(under) if under else min(multi)
            return k, lane, rows2, row_tile

        if fallback is None:
            under = [t for t in tiles if t <= target_rows]
            row_tile = max(under) if under else min(tiles)
            fallback = (k, lane, rows2, row_tile)
    # Small input: min_grid can't be met; one grid step is fine at this size.
    return fallback


def test_net_forward(x, constant1):
    """Pallas equivalent of testNet.forward: x / constant1 (broadcast divide).

    x:          float32 [B, C, H, 128]   (NCHW, W must be 128)
    constant1:  float32 [1, 1, 1, 128]
    """
    B, C, H, W = x.shape
    assert W == 128, "constant1 has last dim 128; input W must match"
    rows = B * C * H

    target_block_bytes, vmem_limit_bytes, min_grid = _chip_plan()
    k, lane, rows2, row_tile = _plan_tiling(rows, W, target_block_bytes, min_grid)
    grid = (rows2 // row_tile,)

    x2d = x.reshape(rows2, lane)
    # Reciprocal hoisted out of the kernel (128 floats, computed once).  Each
    # contiguous 128-chunk of the folded lane axis is one original W row, so
    # tiling the reciprocal k times along lanes reproduces the broadcast.
    inv2d = jnp.tile((1.0 / constant1).reshape(1, W).astype(x.dtype), (1, k))

    itemsize = jnp.dtype(x.dtype).itemsize
    cost = pl.CostEstimate(
        flops=rows * W,                      # one multiply per element
        transcendentals=0,
        bytes_accessed=2 * rows * W * itemsize + lane * itemsize,
    )

    out2d = pl.pallas_call(
        _bcast_mul_kernel,
        out_shape=jax.ShapeDtypeStruct((rows2, lane), x.dtype),
        grid_spec=pltpu.PrefetchScalarGridSpec(
            num_scalar_prefetch=0,
            grid=grid,
            in_specs=[
                # If profiling shows exposed DMA at step boundaries on v7x, add
                # pipeline_mode=pl.Buffered(3) here (input only) and re-check
                # the per-generation VMEM fit.
                pl.BlockSpec((row_tile, lane), lambda i: (i, 0)),
                pl.BlockSpec((1, lane), lambda i: (0, 0)),
            ],
            out_specs=pl.BlockSpec((row_tile, lane), lambda i: (i, 0)),
        ),
        compiler_params=pltpu.CompilerParams(
            dimension_semantics=("parallel",),
            # Generation-specific scoped-VMEM budget: blocks are capped at the
            # per-chip target, so double-buffered in + out fits with headroom
            # (v5e/v6e: 128 MiB physical, v7x: 64 MiB physical per TC).
            vmem_limit_bytes=vmem_limit_bytes,
        ),
        cost_estimate=cost,
    )(x2d, inv2d)

    return out2d.reshape(B, C, H, W)


if __name__ == "__main__":
    key = jax.random.PRNGKey(0)
    k_x, k_c = jax.random.split(key)

    # Small shapes consistent with the module: W must be 128 to broadcast
    # against the [1, 1, 1, 128] constant.
    B, C, H, W = 2, 4, 8, 128
    x = jax.random.normal(k_x, (B, C, H, W), dtype=jnp.float32)

    # torch.rand -> uniform [0, 1); deterministic init in-script.
    constant1 = jax.random.uniform(
        k_c, (1, 1, 1, 128), dtype=jnp.float32, minval=0.0, maxval=1.0
    )

    out = test_net_forward(x, constant1)
    out = jax.block_until_ready(out)

    # Cross-check against plain JAX broadcasting division.
    # (reciprocal-multiply differs from exact division by at most a few ULPs)
    ref = x / constant1
    assert jnp.allclose(out, ref, rtol=1e-5, atol=1e-6), "mismatch vs reference"

    print("KERNEL_OK")
</pallas_src>

<mosaic_0001>
module attributes {stable_mosaic.version = 11 : i64} {
  func.func @_bcast_mul_kernel(%arg0: i32, %arg1: memref<8x1024xf32, #tpu.memory_space<vmem>>, %arg2: memref<1x1024xf32, #tpu.memory_space<vmem>>, %arg3: memref<8x1024xf32, #tpu.memory_space<vmem>>) attributes {dimension_semantics = [#tpu.dimension_semantics<parallel>], iteration_bounds = array<i64: 1>, scalar_prefetch = 0 : i64, scratch_operands = 0 : i64, tpu.core_type = #tpu.core_type<tc>, window_params = [{transform_indices = @transform_0, window_bounds = array<i64: 8, 1024>}, {pipeline_mode = #tpu.pipeline_mode<synchronous>, transform_indices = @transform_1, window_bounds = array<i64: 1, 1024>}, {transform_indices = @transform_2, window_bounds = array<i64: 8, 1024>}]} {
    %c0 = arith.constant 0 : index
    %c0_0 = arith.constant 0 : index
    %0 = vector.load %arg1[%c0, %c0_0] : memref<8x1024xf32, #tpu.memory_space<vmem>>, vector<8x1024xf32>
    %c0_1 = arith.constant 0 : index
    %c0_2 = arith.constant 0 : index
    %1 = vector.load %arg2[%c0_1, %c0_2] : memref<1x1024xf32, #tpu.memory_space<vmem>>, vector<1x1024xf32>
    %2 = vector.broadcast %1 : vector<1x1024xf32> to vector<8x1024xf32>
    %3 = arith.mulf %0, %2 : vector<8x1024xf32>
    %c0_3 = arith.constant 0 : index
    %c0_4 = arith.constant 0 : index
    %4 = vector.load %arg3[%c0_3, %c0_4] : memref<8x1024xf32, #tpu.memory_space<vmem>>, vector<8x1024xf32>
    tpu.vector_store %arg3[%c0_3, %c0_4], %3 {strides = array<i32>} : memref<8x1024xf32, #tpu.memory_space<vmem>>, vector<8x1024xf32>,
    return
  }
  func.func @transform_0(%arg0: i32) -> (i32, i32) {
    %c0_i32 = arith.constant 0 : i32
    %c0_i32_0 = arith.constant 0 : i32
    return %arg0, %c0_i32 : i32, i32
  }
  func.func @transform_1(%arg0: i32) -> (i32, i32) {
    %c0_i32 = arith.constant 0 : i32
    %c0_i32_0 = arith.constant 0 : i32
    %c0_i32_1 = arith.constant 0 : i32
    return %c0_i32, %c0_i32_0 : i32, i32
  }
  func.func @transform_2(%arg0: i32) -> (i32, i32) {
    %c0_i32 = arith.constant 0 : i32
    %c0_i32_0 = arith.constant 0 : i32
    return %arg0, %c0_i32 : i32, i32
  }
}

</mosaic_0001>

<llo_original>
// kernel: tpu_custom_call.1
$region0: #{tpu_custom_call.1}
  #allocation0 [shape = 'u32[]', space=smem, size = 0x4, offset = 0x4, fixed_abs, tag = 'smem constant byte address 0x4 - core index']
  #allocation1 [shape = 'u32[144,128]{1,0:T(1,128)}', space=vmem, size = 0x12000, scoped, tag = 'internal scratch']
  %s0 = inlined_call_operand.hbm [shape: f32[8,1024], index: 0, kind: input, shape index: {}]
  %s1 = inlined_call_operand.hbm [shape: f32[1,1024], index: 1, kind: input, shape index: {}]
  %s2 = inlined_call_operand.hbm [shape: f32[8,1024], index: 2, kind: output, shape index: {}]
  %s3 = sld [smem:[#allocation0]]
  $region26: #{tpu_custom_call.1} parent=0
    _
  %s5 = ssub.s32 1, %s3
  %s6 = scalar_select 0, %s5, %s3
  $region1: #{tpu_custom_call.1} parent=0
    #allocation2 [shape = 'u8[32768]{0}', space=vmem, size = 0x8000, scoped, tag = 'input window, operand 0, single buffered']
    #allocation3 [shape = 's32[1]{0}', space=sflag, size = 0x4, scoped, tag = 'scoped memory for tpu_custom_call.1']
    #allocation4 [shape = 's32[1]{0}', space=sflag, size = 0x4, scoped, tag = 'scoped memory for tpu_custom_call.1']
    #allocation5 [shape = 'u8[4096]{0}', space=vmem, size = 0x1000, scoped, tag = 'input window, operand 1, single buffered']
    #allocation6 [shape = 's32[1]{0}', space=sflag, size = 0x4, scoped, tag = 'scoped memory for tpu_custom_call.1']
    #allocation7 [shape = 'u8[32768]{0}', space=vmem, size = 0x8000, scoped, tag = 'output window, operand 0, single buffered']
    %7 = vsyncpa [#allocation3], 0
    %8 = vsyncpa [#allocation6], 0
    %9 = vsyncpa [#allocation4], 0
    // Predicated region
    $region2: #{tpu_custom_call.1} parent=1 // pred_check
      _
    $region3: #{tpu_custom_call.1} parent=1 // pred_check_branch
      %11 = sbr.rel (0) target = $region5
    $region4: #{tpu_custom_call.1} parent=1 // pred_region
      %s13 = ssub.s32 1024, 1024
      %14 = vsyncadd [#allocation3], %s13
      %s16 = sshll.u32 [#allocation2], 4
      %s17 = int_to_ptr.vmem [resolvable:$true] %s16
      %19 = dma.hbm_to_vmem [thread:$0]  %s0, 1024, %s17, [#allocation3]
    $region5: #{tpu_custom_call.1} parent=1 // pred_fallthru
      _
    // Predicated region
    $region6: #{tpu_custom_call.1} parent=1 // pred_check
      _
    $region7: #{tpu_custom_call.1} parent=1 // pred_check_branch
      %21 = sbr.rel (0) target = $region9
    $region8: #{tpu_custom_call.1} parent=1 // pred_region
      %s23 = ssub.s32 128, 128
      %24 = vsyncadd [#allocation6], %s23
      %s26 = sshll.u32 [#allocation5], 4
      %s27 = int_to_ptr.vmem [resolvable:$true] %s26
      %29 = dma.hbm_to_vmem [thread:$0]  %s1, 128, %s27, [#allocation6]
    $region9: #{tpu_custom_call.1} parent=1 // pred_fallthru
      _
    // Predicated region
    $region10: #{tpu_custom_call.1} parent=1 // pred_check
      _
    $region11: #{tpu_custom_call.1} parent=1 // pred_check_branch
      %31 = sbr.rel (0) target = $region13
    $region12: #{tpu_custom_call.1} parent=1 // pred_region
      %32 = dma.done [#allocation3], 1024
    $region13: #{tpu_custom_call.1} parent=1 // pred_fallthru
      _
    // Predicated region
    $region14: #{tpu_custom_call.1} parent=1 // pred_check
      _
    $region15: #{tpu_custom_call.1} parent=1 // pred_check_branch
      %34 = sbr.rel (0) target = $region17
    $region16: #{tpu_custom_call.1} parent=1 // pred_region
      %35 = dma.done [#allocation6], 128
    $region17: #{tpu_custom_call.1} parent=1 // pred_fallthru
      _
    %v36 = vld [vmem:[#allocation2] sm:$0xff]
    %v37 = vld [vmem:[#allocation2 + $0x8] sm:$0xff]
    %v38 = vld [vmem:[#allocation2 + $0x10] sm:$0xff]
    %v39 = vld [vmem:[#allocation2 + $0x18] sm:$0xff]
    %v40 = vld [vmem:[#allocation2 + $0x20] sm:$0xff]
    %v41 = vld [vmem:[#allocation2 + $0x28] sm:$0xff]
    %v42 = vld [vmem:[#allocation2 + $0x30] sm:$0xff]
    %v43 = vld [vmem:[#allocation2 + $0x38] sm:$0xff]
    %v44 = vld [vmem:[#allocation5] sm:$0xff]
    %v46 = vlaneseq
    %v47 = vshrl.u32 %v46, 7
    %v48 = vsub.s32 0, %v47
    %v49 = vrot.slane %v44, %v48
    %v50 = vlaneseq
    %v51 = vshrl.u32 %v50, 7
    %v52 = vsub.s32 1, %v51
    %v53 = vrot.slane %v44, %v52
    %v54 = vlaneseq
    %v55 = vshrl.u32 %v54, 7
    %v56 = vsub.s32 2, %v55
    %v57 = vrot.slane %v44, %v56
    %v58 = vlaneseq
    %v59 = vshrl.u32 %v58, 7
    %v60 = vsub.s32 3, %v59
    %v61 = vrot.slane %v44, %v60
    %v62 = vlaneseq
    %v63 = vshrl.u32 %v62, 7
    %v64 = vsub.s32 4, %v63
    %v65 = vrot.slane %v44, %v64
    %v66 = vlaneseq
    %v67 = vshrl.u32 %v66, 7
    %v68 = vsub.s32 5, %v67
    %v69 = vrot.slane %v44, %v68
    %v70 = vlaneseq
    %v71 = vshrl.u32 %v70, 7
    %v72 = vsub.s32 6, %v71
    %v73 = vrot.slane %v44, %v72
    %v74 = vlaneseq
    %v75 = vshrl.u32 %v74, 7
    %v76 = vsub.s32 7, %v75
    %v77 = vrot.slane %v44, %v76
    %v86 = vmul.f32 %v36, %v49
    %v87 = vmul.f32 %v37, %v53
    %v88 = vmul.f32 %v38, %v57
    %v89 = vmul.f32 %v39, %v61
    %v90 = vmul.f32 %v40, %v65
    %v91 = vmul.f32 %v41, %v69
    %v92 = vmul.f32 %v42, %v73
    %v93 = vmul.f32 %v43, %v77
    %94 = vst [vmem:[#allocation7] sm:$0xff] %v86
    %95 = vst [vmem:[#allocation7 + $0x8] sm:$0xff] %v87
    %96 = vst [vmem:[#allocation7 + $0x10] sm:$0xff] %v88
    %97 = vst [vmem:[#allocation7 + $0x18] sm:$0xff] %v89
    %98 = vst [vmem:[#allocation7 + $0x20] sm:$0xff] %v90
    %99 = vst [vmem:[#allocation7 + $0x28] sm:$0xff] %v91
    %100 = vst [vmem:[#allocation7 + $0x30] sm:$0xff] %v92
    %101 = vst [vmem:[#allocation7 + $0x38] sm:$0xff] %v93
    // Predicated region
    $region18: #{tpu_custom_call.1} parent=1 // pred_check
      _
    $region19: #{tpu_custom_call.1} parent=1 // pred_check_branch
      %103 = sbr.rel (0) target = $region21
    $region20: #{tpu_custom_call.1} parent=1 // pred_region
      %s105 = ssub.s32 1024, 1024
      %106 = vsyncadd [#allocation4], %s105
      %s108 = sshll.u32 [#allocation7], 4
      %s109 = int_to_ptr.vmem [resolvable:$true] %s108
      %111 = dma.vmem_to_hbm [thread:$0]  %s109, 1024, %s2, [#allocation4]
    $region21: #{tpu_custom_call.1} parent=1 // pred_fallthru
      _
    // Predicated region
    $region22: #{tpu_custom_call.1} parent=1 // pred_check
      _
    $region23: #{tpu_custom_call.1} parent=1 // pred_check_branch
      %113 = sbr.rel (0) target = $region25
    $region24: #{tpu_custom_call.1} parent=1 // pred_region
      %114 = dma.done [#allocation4], 1024
    $region25: #{tpu_custom_call.1} parent=1 // pred_fallthru
      _
    %115 = vsyncpa [#allocation3], 1
    %116 = vsyncpa [#allocation6], 1
    %117 = vsyncpa [#allocation4], 1

</llo_original>
